<compile_context>
chip_gen: v6e
topology: v6e:2x2x1
jax: 0.10.0
libtpu: 0.0.40
codegen_flags: <defaults>
</compile_context>

<pallas_src>
import jax
import jax.numpy as jnp
from jax.experimental import pallas as pl
from jax.experimental.pallas import tpu as pltpu

_LANES = 128                    # vreg lane width; last dim of the slab
_TILE_BYTES = 2 * 1024 * 1024   # ~2 MiB/block -> in+out double-buffered = 8 MiB VMEM
_PALLAS_MIN_ELEMS = 256 * 1024  # below ~1 MiB of data, fused jnp.maximum wins


def _relu_kernel(x_ref, o_ref):
    # One vmax per vreg on the VPU; weak-typed 0 avoids a cast/broadcast temp.
    o_ref[...] = jnp.maximum(x_ref[...], 0)


def relu_pallas(x: jax.Array, *, tile_rows: int | None = None,
                min_pallas_elems: int = _PALLAS_MIN_ELEMS) -> jax.Array:
    """Elementwise ReLU. Any shape/dtype; returns same shape/dtype."""
    orig_shape = x.shape
    total = x.size
    itemsize = jnp.dtype(x.dtype).itemsize

    # Tiny inputs: the pallas_call boundary + wrapper reshapes cost more than
    # the work itself; let XLA fuse a plain maximum instead.
    if total < min_pallas_elems:
        return jnp.maximum(x, 0)

    # Lane-dense slab: pad (at most once) so the flat length is a multiple of
    # 128.  The row axis is NOT padded up to the tile size; the partial last
    # block's out-of-bounds stores are masked by Pallas, so no second pad pass
    # and no garbage ever reaches HBM.
    rows = pl.cdiv(total, _LANES)
    padded = rows * _LANES
    flat = x.reshape(-1)
    if padded != total:
        flat = jnp.pad(flat, (0, padded - total))
    x2d = flat.reshape(rows, _LANES)

    if tile_rows is None:
        # ~2 MiB per block, dtype-aware (f32 -> 4096 rows, bf16 -> 8192, ...);
        # always a multiple of 32 so bf16/int8 sublane packing stays aligned.
        tile_rows = max(512, _TILE_BYTES // (_LANES * itemsize))
    if rows <= tile_rows:
        tile_rows = rows          # block == full array -> no (8,128) constraint
    grid_rows = pl.cdiv(rows, tile_rows)

    out2d = pl.pallas_call(
        _relu_kernel,
        out_shape=jax.ShapeDtypeStruct((rows, _LANES), x.dtype),
        grid=(grid_rows,),
        in_specs=[pl.BlockSpec((tile_rows, _LANES), lambda i: (i, 0))],
        out_specs=pl.BlockSpec((tile_rows, _LANES), lambda i: (i, 0)),
        compiler_params=pltpu.CompilerParams(
            # TODO(synk): switch to pltpu.CORE_PARALLEL on v7x (2 TCs/chip)
            # once chip-gated; plain "parallel" does not change core assignment
            # but is safe on all generations.
            dimension_semantics=("parallel",),
        ),
        cost_estimate=pl.CostEstimate(
            flops=padded,
            transcendentals=0,
            bytes_accessed=2 * padded * itemsize,
        ),
        # TODO(synk): input_output_aliases={0: 0} + caller-side donation when x
        # is never reused (skipped: non-donated/eager callers would just copy).
    )(x2d)

    if padded == total:
        # Aligned path: pure metadata reshape, no extra HBM pass.
        return out2d.reshape(orig_shape)
    return out2d.reshape(-1)[:total].reshape(orig_shape)


if __name__ == "__main__":
    key = jax.random.PRNGKey(0)

    # Mirror the PyTorch spec: input = torch.reshape(input, (-1, 1, 2, 2)).
    flat = jax.random.normal(key, (2048 * 4,), dtype=jnp.float32)
    x = flat.reshape(-1, 1, 2, 2)              # (2048, 1, 2, 2), 8192 elements
    ref = jnp.maximum(x, 0.0)

    # Default path for such a small tensor is the fused jnp.maximum fallback.
    out_fused = relu_pallas(x)
    # Force the Pallas kernel on the spec-sized input (lane-aligned, 1 block).
    out_pallas = relu_pallas(x, min_pallas_elems=0)
    jax.block_until_ready((out_fused, out_pallas))
    assert out_pallas.shape == x.shape and out_pallas.dtype == x.dtype
    assert jnp.array_equal(out_fused, ref)
    assert jnp.array_equal(out_pallas, ref)

    # Multi-block grid + lane pad + masked partial last block, at tiny shapes:
    # 2050*4 = 8200 elems -> 65 rows; tile_rows=64 -> grid of 2, last block
    # covers only 1 valid row.
    x2 = jax.random.normal(jax.random.PRNGKey(1), (2050, 1, 2, 2), jnp.float32)
    out2 = relu_pallas(x2, tile_rows=64, min_pallas_elems=0)
    jax.block_until_ready(out2)
    assert out2.shape == x2.shape
    assert jnp.array_equal(out2, jnp.maximum(x2, 0.0))

    # bf16: dtype-aware tile sizing, single full-array block.
    x3 = jax.random.normal(jax.random.PRNGKey(2), (2048, 1, 2, 2), jnp.bfloat16)
    out3 = relu_pallas(x3, min_pallas_elems=0)
    jax.block_until_ready(out3)
    assert out3.dtype == jnp.bfloat16
    assert jnp.array_equal(out3, jnp.maximum(x3, 0))

    print("KERNEL_OK")
</pallas_src>

<mosaic_0001>
module attributes {stable_mosaic.version = 11 : i64} {
  func.func @_relu_kernel(%arg0: i32, %arg1: memref<64x128xf32, #tpu.memory_space<vmem>>, %arg2: memref<64x128xf32, #tpu.memory_space<vmem>>) attributes {dimension_semantics = [#tpu.dimension_semantics<parallel>], iteration_bounds = array<i64: 1>, scalar_prefetch = 0 : i64, scratch_operands = 0 : i64, tpu.core_type = #tpu.core_type<tc>, window_params = [{transform_indices = @transform_0, window_bounds = array<i64: 64, 128>}, {transform_indices = @transform_1, window_bounds = array<i64: 64, 128>}]} {
    %c0 = arith.constant 0 : index
    %c0_0 = arith.constant 0 : index
    %0 = vector.load %arg1[%c0, %c0_0] : memref<64x128xf32, #tpu.memory_space<vmem>>, vector<64x128xf32>
    %cst = arith.constant 0.000000e+00 : f32
    %1 = vector.broadcast %cst : f32 to vector<64x128xf32>
    %2 = arith.maximumf %0, %1 : vector<64x128xf32>
    %c0_1 = arith.constant 0 : index
    %c0_2 = arith.constant 0 : index
    %3 = vector.load %arg2[%c0_1, %c0_2] : memref<64x128xf32, #tpu.memory_space<vmem>>, vector<64x128xf32>
    tpu.vector_store %arg2[%c0_1, %c0_2], %2 {strides = array<i32>} : memref<64x128xf32, #tpu.memory_space<vmem>>, vector<64x128xf32>,
    return
  }
  func.func @transform_0(%arg0: i32) -> (i32, i32) {
    %c0_i32 = arith.constant 0 : i32
    %c0_i32_0 = arith.constant 0 : i32
    return %arg0, %c0_i32 : i32, i32
  }
  func.func @transform_1(%arg0: i32) -> (i32, i32) {
    %c0_i32 = arith.constant 0 : i32
    %c0_i32_0 = arith.constant 0 : i32
    return %arg0, %c0_i32 : i32, i32
  }
}

</mosaic_0001>

<llo_original>
// kernel: tpu_custom_call.1
$region0: #{tpu_custom_call.1}
  #allocation0 [shape = 'u32[]', space=smem, size = 0x4, offset = 0x4, fixed_abs, tag = 'smem constant byte address 0x4 - core index']
  #allocation1 [shape = 'u32[144,128]{1,0:T(1,128)}', space=vmem, size = 0x12000, scoped, tag = 'internal scratch']
  %s0 = inlined_call_operand.hbm [shape: f32[64,128], index: 0, kind: input, shape index: {}]
  %s1 = inlined_call_operand.hbm [shape: f32[64,128], index: 1, kind: output, shape index: {}]
  %s2 = sld [smem:[#allocation0]]
  $region18: #{tpu_custom_call.1} parent=0
    _
  %s4 = ssub.s32 1, %s2
  %s5 = scalar_select 0, %s4, %s2
  $region1: #{tpu_custom_call.1} parent=0
    #allocation2 [shape = 'u8[32768]{0}', space=vmem, size = 0x8000, scoped, tag = 'input window, operand 0, single buffered']
    #allocation3 [shape = 's32[1]{0}', space=sflag, size = 0x4, scoped, tag = 'scoped memory for tpu_custom_call.1']
    #allocation4 [shape = 's32[1]{0}', space=sflag, size = 0x4, scoped, tag = 'scoped memory for tpu_custom_call.1']
    #allocation5 [shape = 'u8[32768]{0}', space=vmem, size = 0x8000, scoped, tag = 'output window, operand 0, single buffered']
    %6 = vsyncpa [#allocation3], 0
    %7 = vsyncpa [#allocation4], 0
    // Predicated region
    $region2: #{tpu_custom_call.1} parent=1 // pred_check
      _
    $region3: #{tpu_custom_call.1} parent=1 // pred_check_branch
      %9 = sbr.rel (0) target = $region5
    $region4: #{tpu_custom_call.1} parent=1 // pred_region
      %s11 = ssub.s32 1024, 1024
      %12 = vsyncadd [#allocation3], %s11
      %s13 = sshll.u32 [#allocation2], 4
      %s14 = int_to_ptr.vmem [resolvable:$true] %s13
      %19 = dma.hbm_to_vmem [thread:$0]  %s0, 1024, %s14, [#allocation3], 128, 128, 8
    $region5: #{tpu_custom_call.1} parent=1 // pred_fallthru
      _
    // Predicated region
    $region6: #{tpu_custom_call.1} parent=1 // pred_check
      _
    $region7: #{tpu_custom_call.1} parent=1 // pred_check_branch
      %21 = sbr.rel (0) target = $region9
    $region8: #{tpu_custom_call.1} parent=1 // pred_region
      %22 = dma.done [#allocation3], 1024
    $region9: #{tpu_custom_call.1} parent=1 // pred_fallthru
      _
    %v23 = vld [vmem:[#allocation2] sm:$0xff]
    %v24 = vld [vmem:[#allocation2 + $0x8] sm:$0xff]
    %v25 = vld [vmem:[#allocation2 + $0x10] sm:$0xff]
    %v26 = vld [vmem:[#allocation2 + $0x18] sm:$0xff]
    %v27 = vld [vmem:[#allocation2 + $0x20] sm:$0xff]
    %v28 = vld [vmem:[#allocation2 + $0x28] sm:$0xff]
    %v29 = vld [vmem:[#allocation2 + $0x30] sm:$0xff]
    %v30 = vld [vmem:[#allocation2 + $0x38] sm:$0xff]
    %v31 = vmax.f32 %v23, 0.0
    %v32 = vmax.f32 %v24, 0.0
    %v33 = vmax.f32 %v25, 0.0
    %v34 = vmax.f32 %v26, 0.0
    %v35 = vmax.f32 %v27, 0.0
    %v36 = vmax.f32 %v28, 0.0
    %v37 = vmax.f32 %v29, 0.0
    %v38 = vmax.f32 %v30, 0.0
    %39 = vst [vmem:[#allocation5] sm:$0xff] %v31
    %40 = vst [vmem:[#allocation5 + $0x8] sm:$0xff] %v32
    %41 = vst [vmem:[#allocation5 + $0x10] sm:$0xff] %v33
    %42 = vst [vmem:[#allocation5 + $0x18] sm:$0xff] %v34
    %43 = vst [vmem:[#allocation5 + $0x20] sm:$0xff] %v35
    %44 = vst [vmem:[#allocation5 + $0x28] sm:$0xff] %v36
    %45 = vst [vmem:[#allocation5 + $0x30] sm:$0xff] %v37
    %46 = vst [vmem:[#allocation5 + $0x38] sm:$0xff] %v38
    // Predicated region
    $region10: #{tpu_custom_call.1} parent=1 // pred_check
      _
    $region11: #{tpu_custom_call.1} parent=1 // pred_check_branch
      %48 = sbr.rel (0) target = $region13
    $region12: #{tpu_custom_call.1} parent=1 // pred_region
      %s50 = ssub.s32 1024, 1024
      %51 = vsyncadd [#allocation4], %s50
      %s52 = sshll.u32 [#allocation5], 4
      %s53 = int_to_ptr.vmem [resolvable:$true] %s52
      %58 = dma.vmem_to_hbm [thread:$0]  %s53, 1024, %s1, [#allocation4], 128, 128, 8
    $region13: #{tpu_custom_call.1} parent=1 // pred_fallthru
      _
    // Predicated region
    $region14: #{tpu_custom_call.1} parent=1 // pred_check
      _
    $region15: #{tpu_custom_call.1} parent=1 // pred_check_branch
      %60 = sbr.rel (0) target = $region17
    $region16: #{tpu_custom_call.1} parent=1 // pred_region
      %61 = dma.done [#allocation4], 1024
    $region17: #{tpu_custom_call.1} parent=1 // pred_fallthru
      _
    %62 = vsyncpa [#allocation3], 1
    %63 = vsyncpa [#allocation4], 1

</llo_original>
